<compile_context>
chip_gen: v5e
topology: v5e:2x2
jax: 0.10.0
libtpu: 0.0.40
codegen_flags: <defaults>
</compile_context>

<pallas_src>
import functools

import jax
import jax.numpy as jnp
from jax.experimental import pallas as pl
from jax.experimental.pallas import tpu as pltpu


def _down_conv_kernel(x_ref, w1_ref, p1_ref, w2_ref, p2_ref, mask_ref, o_ref,
                      xp1_ref, col1_ref, xp2_ref, col2_ref, *, H, W, off):
    """Fused (conv3x3 -> bias -> ReLU -> BN) x 2 for one batch element.

    x_ref:    (1, Cin, HW)        flattened NCHW input tile
    w1_ref:   (Cout, 9*Cin)       conv1 weights, K = (tap, cin) folded
    p1_ref:   (Cout, 3)           [bias, bn_scale, bn_shift] for stage 1
    w2_ref:   (Cout, 9*Cout)      conv2 weights
    p2_ref:   (Cout, 3)           [bias, bn_scale, bn_shift] for stage 2
    mask_ref: (9, HW)             tap validity mask (1.0 in-bounds, 0.0 halo/wrap)
    o_ref:    (1, Cout, HW)
    xp*_ref:  (C, HW + 2*off)     zero-haloed flattened image scratch
    col*_ref: (9*C, HW)           im2col scratch
    """
    HW = H * W

    def build_col(xp_ref, col_ref, src):
        cin = src.shape[0]
        # Zero the halo scratch, then drop the image at lane offset `off`
        # (off is a multiple of 128 -> aligned store; center tap slice is aligned too).
        xp_ref[...] = jnp.zeros_like(xp_ref)
        xp_ref[:, off:off + HW] = src
        # im2col: tap t=(dy,dx) is a statically shifted window of the flattened image;
        # out-of-bounds rows read the zero halo, row-wrapped columns are zeroed by the
        # tap mask. Shifts are static lane slices -> XLU work, not VALU/MXU.
        for t in range(9):
            dy, dx = t // 3, t % 3
            start = off + (dy - 1) * W + (dx - 1)
            shifted = xp_ref[:, start:start + HW]                  # (cin, HW)
            col_ref[t * cin:(t + 1) * cin, :] = shifted * mask_ref[t:t + 1, :]
        return col_ref[...]

    def conv_relu_bn(col, w_ref, p_ref):
        # Single MXU matmul over the folded K = 9*cin dimension.
        acc = jnp.dot(w_ref[...], col, preferred_element_type=jnp.float32)  # (Cout, HW)
        bias = p_ref[:, 0:1]
        scale = p_ref[:, 1:2]
        shift = p_ref[:, 2:3]
        acc = jnp.maximum(acc + bias, 0.0)      # conv bias + ReLU
        return acc * scale + shift              # BatchNorm (eval, folded affine)

    x0 = x_ref[0]                                                  # (Cin, HW)
    h1 = conv_relu_bn(build_col(xp1_ref, col1_ref, x0), w1_ref, p1_ref)   # stays in VMEM
    out = conv_relu_bn(build_col(xp2_ref, col2_ref, h1), w2_ref, p2_ref)  # (Cout, HW)
    o_ref[0] = out.astype(o_ref.dtype)


def _flatten_conv_weight(w_oihw):
    # (Cout, Cin, 3, 3) -> (Cout, 9*Cin) with K index = (dy*3+dx)*Cin + cin
    Cout, Cin, KH, KW = w_oihw.shape
    return jnp.transpose(w_oihw, (0, 2, 3, 1)).reshape(Cout, KH * KW * Cin)


def _stage_params(b, gamma, beta, mean, var, eps=1e-5):
    scale = gamma / jnp.sqrt(var + eps)
    shift = beta - mean * scale
    return jnp.stack([b, scale, shift], axis=1)    # (Cout, 3)


def _build_tap_mask(H, W):
    # mask[t, p] = 1.0 iff the source pixel of tap t for flattened position p is in-bounds.
    yy = jnp.repeat(jnp.arange(H, dtype=jnp.int32), W)   # y coord per flattened position
    xx = jnp.tile(jnp.arange(W, dtype=jnp.int32), H)     # x coord per flattened position
    masks = []
    for dy in range(3):
        for dx in range(3):
            oy, ox = dy - 1, dx - 1
            valid = ((yy + oy >= 0) & (yy + oy < H) &
                     (xx + ox >= 0) & (xx + ox < W))
            masks.append(valid.astype(jnp.float32))
    return jnp.stack(masks, axis=0)                      # (9, H*W)


def down_conv_forward(x_nchw, params):
    """Forward of DownConv. x_nchw: (N, Cin, H, W). Returns (N, Cout, H, W)."""
    N, Cin, H, W = x_nchw.shape
    Cout = params["conv1_w"].shape[0]
    HW = H * W
    # Halo offset: >= W+1 and 128-aligned so the image store / center-tap slice are lane-aligned.
    off = ((W + 1 + 127) // 128) * 128
    pad_len = HW + 2 * off

    x = x_nchw.reshape(N, Cin, HW)                       # free, contiguous reshape (no transpose)
    w1 = _flatten_conv_weight(params["conv1_w"])         # (Cout, 9*Cin)
    w2 = _flatten_conv_weight(params["conv2_w"])         # (Cout, 9*Cout)
    p1 = _stage_params(params["conv1_b"], params["bn1_gamma"], params["bn1_beta"],
                       params["bn1_mean"], params["bn1_var"])
    p2 = _stage_params(params["conv2_b"], params["bn2_gamma"], params["bn2_beta"],
                       params["bn2_mean"], params["bn2_var"])
    mask = _build_tap_mask(H, W)                         # (9, HW)

    kernel = functools.partial(_down_conv_kernel, H=H, W=W, off=off)

    out = pl.pallas_call(
        kernel,
        out_shape=jax.ShapeDtypeStruct((N, Cout, HW), jnp.float32),
        grid=(N,),
        in_specs=[
            pl.BlockSpec((1, Cin, HW), lambda n: (n, 0, 0)),
            pl.BlockSpec((Cout, 9 * Cin), lambda n: (0, 0)),
            pl.BlockSpec((Cout, 3), lambda n: (0, 0)),
            pl.BlockSpec((Cout, 9 * Cout), lambda n: (0, 0)),
            pl.BlockSpec((Cout, 3), lambda n: (0, 0)),
            pl.BlockSpec((9, HW), lambda n: (0, 0)),
        ],
        out_specs=pl.BlockSpec((1, Cout, HW), lambda n: (n, 0, 0)),
        scratch_shapes=[
            pltpu.VMEM((Cin, pad_len), jnp.float32),     # haloed input image
            pltpu.VMEM((9 * Cin, HW), jnp.float32),      # im2col, stage 1
            pltpu.VMEM((Cout, pad_len), jnp.float32),    # haloed intermediate
            pltpu.VMEM((9 * Cout, HW), jnp.float32),     # im2col, stage 2
        ],
        compiler_params=pltpu.CompilerParams(
            dimension_semantics=("parallel",)),
    )(x, w1, p1, w2, p2, mask)

    return out.reshape(N, Cout, H, W)


def _reference_forward(x_nchw, params, eps=1e-5):
    """Plain-JAX eval-mode reference (conv -> bias -> ReLU -> BN affine, twice)."""
    def stage(x, w, b, gamma, beta, mean, var):
        y = jax.lax.conv_general_dilated(
            x, w, window_strides=(1, 1), padding=((1, 1), (1, 1)),
            dimension_numbers=("NCHW", "OIHW", "NCHW"),
            precision=jax.lax.Precision.HIGHEST)
        y = jnp.maximum(y + b.reshape(1, -1, 1, 1), 0.0)
        scale = gamma / jnp.sqrt(var + eps)
        shift = beta - mean * scale
        return y * scale.reshape(1, -1, 1, 1) + shift.reshape(1, -1, 1, 1)

    x = stage(x_nchw, params["conv1_w"], params["conv1_b"], params["bn1_gamma"],
              params["bn1_beta"], params["bn1_mean"], params["bn1_var"])
    x = stage(x, params["conv2_w"], params["conv2_b"], params["bn2_gamma"],
              params["bn2_beta"], params["bn2_mean"], params["bn2_var"])
    return x


def init_params(key, in_feat, out_feat):
    ks = jax.random.split(key, 8)
    bound1 = 1.0 / jnp.sqrt(in_feat * 9)
    bound2 = 1.0 / jnp.sqrt(out_feat * 9)
    return {
        # Conv2d default init: uniform(-1/sqrt(fan_in), 1/sqrt(fan_in))
        "conv1_w": jax.random.uniform(ks[0], (out_feat, in_feat, 3, 3),
                                      jnp.float32, -bound1, bound1),
        "conv1_b": jax.random.uniform(ks[1], (out_feat,), jnp.float32, -bound1, bound1),
        "conv2_w": jax.random.uniform(ks[2], (out_feat, out_feat, 3, 3),
                                      jnp.float32, -bound2, bound2),
        "conv2_b": jax.random.uniform(ks[3], (out_feat,), jnp.float32, -bound2, bound2),
        # BatchNorm params / running stats (nontrivial to exercise the math)
        "bn1_gamma": 1.0 + 0.1 * jax.random.normal(ks[4], (out_feat,), jnp.float32),
        "bn1_beta": 0.1 * jax.random.normal(ks[5], (out_feat,), jnp.float32),
        "bn1_mean": 0.05 * jnp.arange(out_feat, dtype=jnp.float32),
        "bn1_var": 1.0 + 0.02 * jnp.arange(out_feat, dtype=jnp.float32),
        "bn2_gamma": 1.0 + 0.1 * jax.random.normal(ks[6], (out_feat,), jnp.float32),
        "bn2_beta": 0.1 * jax.random.normal(ks[7], (out_feat,), jnp.float32),
        "bn2_mean": 0.03 * jnp.arange(out_feat, dtype=jnp.float32),
        "bn2_var": 1.0 + 0.01 * jnp.arange(out_feat, dtype=jnp.float32),
    }


if __name__ == "__main__":
    key = jax.random.PRNGKey(0)
    kx, kp = jax.random.split(key)

    N, Cin, Cout, H, W = 2, 4, 8, 16, 16
    x = jax.random.normal(kx, (N, Cin, H, W), dtype=jnp.float32)
    params = init_params(kp, Cin, Cout)

    fwd = jax.jit(functools.partial(down_conv_forward, params=params))
    out = fwd(x)
    jax.block_until_ready(out)

    assert out.shape == (N, Cout, H, W), out.shape
    assert out.dtype == jnp.float32

    # Numerical sanity check against a plain-JAX reference (loose tol: only catches
    # real indexing/fold bugs, not MXU precision noise).
    ref = jax.jit(functools.partial(_reference_forward, params=params))(x)
    jax.block_until_ready(ref)
    max_err = float(jnp.max(jnp.abs(out - ref)))
    assert max_err < 1e-1, f"max abs err vs reference: {max_err}"

    print("KERNEL_OK")
</pallas_src>

<mosaic_0001>
module attributes {stable_mosaic.version = 11 : i64} {
  func.func @_down_conv_kernel(%arg0: i32, %arg1: memref<1x4x256xf32, #tpu.memory_space<vmem>>, %arg2: memref<8x36xf32, #tpu.memory_space<vmem>>, %arg3: memref<8x3xf32, #tpu.memory_space<vmem>>, %arg4: memref<8x72xf32, #tpu.memory_space<vmem>>, %arg5: memref<8x3xf32, #tpu.memory_space<vmem>>, %arg6: memref<9x256xf32, #tpu.memory_space<vmem>>, %arg7: memref<1x8x256xf32, #tpu.memory_space<vmem>>, %arg8: memref<4x512xf32, #tpu.memory_space<vmem>>, %arg9: memref<36x256xf32, #tpu.memory_space<vmem>>, %arg10: memref<8x512xf32, #tpu.memory_space<vmem>>, %arg11: memref<72x256xf32, #tpu.memory_space<vmem>>) attributes {dimension_semantics = [#tpu.dimension_semantics<parallel>], iteration_bounds = array<i64: 2>, scalar_prefetch = 0 : i64, scratch_operands = 4 : i64, tpu.core_type = #tpu.core_type<tc>, window_params = [{transform_indices = @transform_0, window_bounds = array<i64: 1, 4, 256>}, {pipeline_mode = #tpu.pipeline_mode<synchronous>, transform_indices = @transform_1, window_bounds = array<i64: 8, 36>}, {pipeline_mode = #tpu.pipeline_mode<synchronous>, transform_indices = @transform_2, window_bounds = array<i64: 8, 3>}, {pipeline_mode = #tpu.pipeline_mode<synchronous>, transform_indices = @transform_3, window_bounds = array<i64: 8, 72>}, {pipeline_mode = #tpu.pipeline_mode<synchronous>, transform_indices = @transform_4, window_bounds = array<i64: 8, 3>}, {pipeline_mode = #tpu.pipeline_mode<synchronous>, transform_indices = @transform_5, window_bounds = array<i64: 9, 256>}, {transform_indices = @transform_6, window_bounds = array<i64: 1, 8, 256>}]} {
    %c0 = arith.constant 0 : index
    %c0_0 = arith.constant 0 : index
    %c0_1 = arith.constant 0 : index
    %0 = vector.load %arg1[%c0, %c0_0, %c0_1] : memref<1x4x256xf32, #tpu.memory_space<vmem>>, vector<1x4x256xf32>
    %1 = vector.shape_cast %0 : vector<1x4x256xf32> to vector<4x256xf32>
    %cst = arith.constant 0.000000e+00 : f32
    %2 = vector.broadcast %cst : f32 to vector<4x512xf32>
    %c0_2 = arith.constant 0 : index
    %c0_3 = arith.constant 0 : index
    %3 = vector.load %arg8[%c0_2, %c0_3] : memref<4x512xf32, #tpu.memory_space<vmem>>, vector<4x512xf32>
    tpu.vector_store %arg8[%c0_2, %c0_3], %2 {strides = array<i32>} : memref<4x512xf32, #tpu.memory_space<vmem>>, vector<4x512xf32>,
    %c0_4 = arith.constant 0 : index
    %c128 = arith.constant 128 : index
    %4 = vector.load %arg8[%c0_4, %c128] : memref<4x512xf32, #tpu.memory_space<vmem>>, vector<4x256xf32>
    tpu.vector_store %arg8[%c0_4, %c128], %1 {strides = array<i32>} : memref<4x512xf32, #tpu.memory_space<vmem>>, vector<4x256xf32>,
    %c0_5 = arith.constant 0 : index
    %c111 = arith.constant 111 : index
    %5 = vector.load %arg8[%c0_5, %c111] : memref<4x512xf32, #tpu.memory_space<vmem>>, vector<4x256xf32>
    %c0_6 = arith.constant 0 : index
    %c0_7 = arith.constant 0 : index
    %6 = vector.load %arg6[%c0_6, %c0_7] : memref<9x256xf32, #tpu.memory_space<vmem>>, vector<1x256xf32>
    %7 = vector.broadcast %6 : vector<1x256xf32> to vector<4x256xf32>
    %8 = arith.mulf %5, %7 : vector<4x256xf32>
    %c0_8 = arith.constant 0 : index
    %c0_9 = arith.constant 0 : index
    %9 = vector.load %arg9[%c0_8, %c0_9] : memref<36x256xf32, #tpu.memory_space<vmem>>, vector<4x256xf32>
    tpu.vector_store %arg9[%c0_8, %c0_9], %8 {strides = array<i32>} : memref<36x256xf32, #tpu.memory_space<vmem>>, vector<4x256xf32>,
    %c0_10 = arith.constant 0 : index
    %c112 = arith.constant 112 : index
    %10 = vector.load %arg8[%c0_10, %c112] : memref<4x512xf32, #tpu.memory_space<vmem>>, vector<4x256xf32>
    %c1 = arith.constant 1 : index
    %c0_11 = arith.constant 0 : index
    %11 = vector.load %arg6[%c1, %c0_11] : memref<9x256xf32, #tpu.memory_space<vmem>>, vector<1x256xf32>
    %12 = vector.broadcast %11 : vector<1x256xf32> to vector<4x256xf32>
    %13 = arith.mulf %10, %12 : vector<4x256xf32>
    %c4 = arith.constant 4 : index
    %c0_12 = arith.constant 0 : index
    %14 = vector.load %arg9[%c4, %c0_12] : memref<36x256xf32, #tpu.memory_space<vmem>>, vector<4x256xf32>
    tpu.vector_store %arg9[%c4, %c0_12], %13 {strides = array<i32>} : memref<36x256xf32, #tpu.memory_space<vmem>>, vector<4x256xf32>,
    %c0_13 = arith.constant 0 : index
    %c113 = arith.constant 113 : index
    %15 = vector.load %arg8[%c0_13, %c113] : memref<4x512xf32, #tpu.memory_space<vmem>>, vector<4x256xf32>
    %c2 = arith.constant 2 : index
    %c0_14 = arith.constant 0 : index
    %16 = vector.load %arg6[%c2, %c0_14] : memref<9x256xf32, #tpu.memory_space<vmem>>, vector<1x256xf32>
    %17 = vector.broadcast %16 : vector<1x256xf32> to vector<4x256xf32>
    %18 = arith.mulf %15, %17 : vector<4x256xf32>
    %c8 = arith.constant 8 : index
    %c0_15 = arith.constant 0 : index
    %19 = vector.load %arg9[%c8, %c0_15] : memref<36x256xf32, #tpu.memory_space<vmem>>, vector<4x256xf32>
    tpu.vector_store %arg9[%c8, %c0_15], %18 {strides = array<i32>} : memref<36x256xf32, #tpu.memory_space<vmem>>, vector<4x256xf32>,
    %c0_16 = arith.constant 0 : index
    %c127 = arith.constant 127 : index
    %20 = vector.load %arg8[%c0_16, %c127] : memref<4x512xf32, #tpu.memory_space<vmem>>, vector<4x256xf32>
    %c3 = arith.constant 3 : index
    %c0_17 = arith.constant 0 : index
    %21 = vector.load %arg6[%c3, %c0_17] : memref<9x256xf32, #tpu.memory_space<vmem>>, vector<1x256xf32>
    %22 = vector.broadcast %21 : vector<1x256xf32> to vector<4x256xf32>
    %23 = arith.mulf %20, %22 : vector<4x256xf32>
    %c12 = arith.constant 12 : index
    %c0_18 = arith.constant 0 : index
    %24 = vector.load %arg9[%c12, %c0_18] : memref<36x256xf32, #tpu.memory_space<vmem>>, vector<4x256xf32>
    tpu.vector_store %arg9[%c12, %c0_18], %23 {strides = array<i32>} : memref<36x256xf32, #tpu.memory_space<vmem>>, vector<4x256xf32>,
    %c0_19 = arith.constant 0 : index
    %c128_20 = arith.constant 128 : index
    %25 = vector.load %arg8[%c0_19, %c128_20] : memref<4x512xf32, #tpu.memory_space<vmem>>, vector<4x256xf32>
    %c4_21 = arith.constant 4 : index
    %c0_22 = arith.constant 0 : index
    %26 = vector.load %arg6[%c4_21, %c0_22] : memref<9x256xf32, #tpu.memory_space<vmem>>, vector<1x256xf32>
    %27 = vector.broadcast %26 : vector<1x256xf32> to vector<4x256xf32>
    %28 = arith.mulf %25, %27 : vector<4x256xf32>
    %c16 = arith.constant 16 : index
    %c0_23 = arith.constant 0 : index
    %29 = vector.load %arg9[%c16, %c0_23] : memref<36x256xf32, #tpu.memory_space<vmem>>, vector<4x256xf32>
    tpu.vector_store %arg9[%c16, %c0_23], %28 {strides = array<i32>} : memref<36x256xf32, #tpu.memory_space<vmem>>, vector<4x256xf32>,
    %c0_24 = arith.constant 0 : index
    %c129 = arith.constant 129 : index
    %30 = vector.load %arg8[%c0_24, %c129] : memref<4x512xf32, #tpu.memory_space<vmem>>, vector<4x256xf32>
    %c5 = arith.constant 5 : index
    %c0_25 = arith.constant 0 : index
    %31 = vector.load %arg6[%c5, %c0_25] : memref<9x256xf32, #tpu.memory_space<vmem>>, vector<1x256xf32>
    %32 = vector.broadcast %31 : vector<1x256xf32> to vector<4x256xf32>
    %33 = arith.mulf %30, %32 : vector<4x256xf32>
    %c20 = arith.constant 20 : index
    %c0_26 = arith.constant 0 : index
    %34 = vector.load %arg9[%c20, %c0_26] : memref<36x256xf32, #tpu.memory_space<vmem>>, vector<4x256xf32>
    tpu.vector_store %arg9[%c20, %c0_26], %33 {strides = array<i32>} : memref<36x256xf32, #tpu.memory_space<vmem>>, vector<4x256xf32>,
    %c0_27 = arith.constant 0 : index
    %c143 = arith.constant 143 : index
    %35 = vector.load %arg8[%c0_27, %c143] : memref<4x512xf32, #tpu.memory_space<vmem>>, vector<4x256xf32>
    %c6 = arith.constant 6 : index
    %c0_28 = arith.constant 0 : index
    %36 = vector.load %arg6[%c6, %c0_28] : memref<9x256xf32, #tpu.memory_space<vmem>>, vector<1x256xf32>
    %37 = vector.broadcast %36 : vector<1x256xf32> to vector<4x256xf32>
    %38 = arith.mulf %35, %37 : vector<4x256xf32>
    %c24 = arith.constant 24 : index
    %c0_29 = arith.constant 0 : index
    %39 = vector.load %arg9[%c24, %c0_29] : memref<36x256xf32, #tpu.memory_space<vmem>>, vector<4x256xf32>
    tpu.vector_store %arg9[%c24, %c0_29], %38 {strides = array<i32>} : memref<36x256xf32, #tpu.memory_space<vmem>>, vector<4x256xf32>,
    %c0_30 = arith.constant 0 : index
    %c144 = arith.constant 144 : index
    %40 = vector.load %arg8[%c0_30, %c144] : memref<4x512xf32, #tpu.memory_space<vmem>>, vector<4x256xf32>
    %c7 = arith.constant 7 : index
    %c0_31 = arith.constant 0 : index
    %41 = vector.load %arg6[%c7, %c0_31] : memref<9x256xf32, #tpu.memory_space<vmem>>, vector<1x256xf32>
    %42 = vector.broadcast %41 : vector<1x256xf32> to vector<4x256xf32>
    %43 = arith.mulf %40, %42 : vector<4x256xf32>
    %c28 = arith.constant 28 : index
    %c0_32 = arith.constant 0 : index
    %44 = vector.load %arg9[%c28, %c0_32] : memref<36x256xf32, #tpu.memory_space<vmem>>, vector<4x256xf32>
    tpu.vector_store %arg9[%c28, %c0_32], %43 {strides = array<i32>} : memref<36x256xf32, #tpu.memory_space<vmem>>, vector<4x256xf32>,
    %c0_33 = arith.constant 0 : index
    %c145 = arith.constant 145 : index
    %45 = vector.load %arg8[%c0_33, %c145] : memref<4x512xf32, #tpu.memory_space<vmem>>, vector<4x256xf32>
    %c8_34 = arith.constant 8 : index
    %c0_35 = arith.constant 0 : index
    %46 = vector.load %arg6[%c8_34, %c0_35] : memref<9x256xf32, #tpu.memory_space<vmem>>, vector<1x256xf32>
    %47 = vector.broadcast %46 : vector<1x256xf32> to vector<4x256xf32>
    %48 = arith.mulf %45, %47 : vector<4x256xf32>
    %c32 = arith.constant 32 : index
    %c0_36 = arith.constant 0 : index
    %49 = vector.load %arg9[%c32, %c0_36] : memref<36x256xf32, #tpu.memory_space<vmem>>, vector<4x256xf32>
    tpu.vector_store %arg9[%c32, %c0_36], %48 {strides = array<i32>} : memref<36x256xf32, #tpu.memory_space<vmem>>, vector<4x256xf32>,
    %c0_37 = arith.constant 0 : index
    %c0_38 = arith.constant 0 : index
    %50 = vector.load %arg9[%c0_37, %c0_38] : memref<36x256xf32, #tpu.memory_space<vmem>>, vector<36x256xf32>
    %c0_39 = arith.constant 0 : index
    %c0_40 = arith.constant 0 : index
    %51 = vector.load %arg2[%c0_39, %c0_40] : memref<8x36xf32, #tpu.memory_space<vmem>>, vector<8x36xf32>
    %cst_41 = arith.constant dense<0.000000e+00> : vector<8x256xf32>
    %52 = tpu.matmul %51, %50, %cst_41 {dimension_numbers = #tpu.dot_dimension_numbers<[1], [0], [0], [1], [0, 0, 1, 1], [], []>} : vector<8x36xf32>, vector<36x256xf32>, vector<8x256xf32> -> vector<8x256xf32>
    %c0_42 = arith.constant 0 : index
    %c0_43 = arith.constant 0 : index
    %53 = vector.load %arg3[%c0_42, %c0_43] : memref<8x3xf32, #tpu.memory_space<vmem>>, vector<8x1xf32>
    %c0_44 = arith.constant 0 : index
    %c1_45 = arith.constant 1 : index
    %54 = vector.load %arg3[%c0_44, %c1_45] : memref<8x3xf32, #tpu.memory_space<vmem>>, vector<8x1xf32>
    %c0_46 = arith.constant 0 : index
    %c2_47 = arith.constant 2 : index
    %55 = vector.load %arg3[%c0_46, %c2_47] : memref<8x3xf32, #tpu.memory_space<vmem>>, vector<8x1xf32>
    %56 = vector.broadcast %53 : vector<8x1xf32> to vector<8x256xf32>
    %57 = arith.addf %52, %56 : vector<8x256xf32>
    %cst_48 = arith.constant 0.000000e+00 : f32
    %58 = vector.broadcast %cst_48 : f32 to vector<8x256xf32>
    %59 = arith.maximumf %57, %58 : vector<8x256xf32>
    %60 = vector.broadcast %54 : vector<8x1xf32> to vector<8x256xf32>
    %61 = arith.mulf %59, %60 : vector<8x256xf32>
    %62 = vector.broadcast %55 : vector<8x1xf32> to vector<8x256xf32>
    %63 = arith.addf %61, %62 : vector<8x256xf32>
    %cst_49 = arith.constant 0.000000e+00 : f32
    %64 = vector.broadcast %cst_49 : f32 to vector<8x512xf32>
    %c0_50 = arith.constant 0 : index
    %c0_51 = arith.constant 0 : index
    %65 = vector.load %arg10[%c0_50, %c0_51] : memref<8x512xf32, #tpu.memory_space<vmem>>, vector<8x512xf32>
    tpu.vector_store %arg10[%c0_50, %c0_51], %64 {strides = array<i32>} : memref<8x512xf32, #tpu.memory_space<vmem>>, vector<8x512xf32>,
    %c0_52 = arith.constant 0 : index
    %c128_53 = arith.constant 128 : index
    %66 = vector.load %arg10[%c0_52, %c128_53] : memref<8x512xf32, #tpu.memory_space<vmem>>, vector<8x256xf32>
    tpu.vector_store %arg10[%c0_52, %c128_53], %63 {strides = array<i32>} : memref<8x512xf32, #tpu.memory_space<vmem>>, vector<8x256xf32>,
    %c0_54 = arith.constant 0 : index
    %c111_55 = arith.constant 111 : index
    %67 = vector.load %arg10[%c0_54, %c111_55] : memref<8x512xf32, #tpu.memory_space<vmem>>, vector<8x256xf32>
    %c0_56 = arith.constant 0 : index
    %c0_57 = arith.constant 0 : index
    %68 = vector.load %arg6[%c0_56, %c0_57] : memref<9x256xf32, #tpu.memory_space<vmem>>, vector<1x256xf32>
    %69 = vector.broadcast %68 : vector<1x256xf32> to vector<8x256xf32>
    %70 = arith.mulf %67, %69 : vector<8x256xf32>
    %c0_58 = arith.constant 0 : index
    %c0_59 = arith.constant 0 : index
    %71 = vector.load %arg11[%c0_58, %c0_59] : memref<72x256xf32, #tpu.memory_space<vmem>>, vector<8x256xf32>
    tpu.vector_store %arg11[%c0_58, %c0_59], %70 {strides = array<i32>} : memref<72x256xf32, #tpu.memory_space<vmem>>, vector<8x256xf32>,
    %c0_60 = arith.constant 0 : index
    %c112_61 = arith.constant 112 : index
    %72 = vector.load %arg10[%c0_60, %c112_61] : memref<8x512xf32, #tpu.memory_space<vmem>>, vector<8x256xf32>
    %c1_62 = arith.constant 1 : index
    %c0_63 = arith.constant 0 : index
    %73 = vector.load %arg6[%c1_62, %c0_63] : memref<9x256xf32, #tpu.memory_space<vmem>>, vector<1x256xf32>
    %74 = vector.broadcast %73 : vector<1x256xf32> to vector<8x256xf32>
    %75 = arith.mulf %72, %74 : vector<8x256xf32>
    %c8_64 = arith.constant 8 : index
    %c0_65 = arith.constant 0 : index
    %76 = vector.load %arg11[%c8_64, %c0_65] : memref<72x256xf32, #tpu.memory_space<vmem>>, vector<8x256xf32>
    tpu.vector_store %arg11[%c8_64, %c0_65], %75 {strides = array<i32>} : memref<72x256xf32, #tpu.memory_space<vmem>>, vector<8x256xf32>,
    %c0_66 = arith.constant 0 : index
    %c113_67 = arith.constant 113 : index
    %77 = vector.load %arg10[%c0_66, %c113_67] : memref<8x512xf32, #tpu.memory_space<vmem>>, vector<8x256xf32>
    %c2_68 = arith.constant 2 : index
    %c0_69 = arith.constant 0 : index
    %78 = vector.load %arg6[%c2_68, %c0_69] : memref<9x256xf32, #tpu.memory_space<vmem>>, vector<1x256xf32>
    %79 = vector.broadcast %78 : vector<1x256xf32> to vector<8x256xf32>
    %80 = arith.mulf %77, %79 : vector<8x256xf32>
    %c16_70 = arith.constant 16 : index
    %c0_71 = arith.constant 0 : index
    %81 = vector.load %arg11[%c16_70, %c0_71] : memref<72x256xf32, #tpu.memory_space<vmem>>, vector<8x256xf32>
    tpu.vector_store %arg11[%c16_70, %c0_71], %80 {strides = array<i32>} : memref<72x256xf32, #tpu.memory_space<vmem>>, vector<8x256xf32>,
    %c0_72 = arith.constant 0 : index
    %c127_73 = arith.constant 127 : index
    %82 = vector.load %arg10[%c0_72, %c127_73] : memref<8x512xf32, #tpu.memory_space<vmem>>, vector<8x256xf32>
    %c3_74 = arith.constant 3 : index
    %c0_75 = arith.constant 0 : index
    %83 = vector.load %arg6[%c3_74, %c0_75] : memref<9x256xf32, #tpu.memory_space<vmem>>, vector<1x256xf32>
    %84 = vector.broadcast %83 : vector<1x256xf32> to vector<8x256xf32>
    %85 = arith.mulf %82, %84 : vector<8x256xf32>
    %c24_76 = arith.constant 24 : index
    %c0_77 = arith.constant 0 : index
    %86 = vector.load %arg11[%c24_76, %c0_77] : memref<72x256xf32, #tpu.memory_space<vmem>>, vector<8x256xf32>
    tpu.vector_store %arg11[%c24_76, %c0_77], %85 {strides = array<i32>} : memref<72x256xf32, #tpu.memory_space<vmem>>, vector<8x256xf32>,
    %c0_78 = arith.constant 0 : index
    %c128_79 = arith.constant 128 : index
    %87 = vector.load %arg10[%c0_78, %c128_79] : memref<8x512xf32, #tpu.memory_space<vmem>>, vector<8x256xf32>
    %c4_80 = arith.constant 4 : index
    %c0_81 = arith.constant 0 : index
    %88 = vector.load %arg6[%c4_80, %c0_81] : memref<9x256xf32, #tpu.memory_space<vmem>>, vector<1x256xf32>
    %89 = vector.broadcast %88 : vector<1x256xf32> to vector<8x256xf32>
    %90 = arith.mulf %87, %89 : vector<8x256xf32>
    %c32_82 = arith.constant 32 : index
    %c0_83 = arith.constant 0 : index
    %91 = vector.load %arg11[%c32_82, %c0_83] : memref<72x256xf32, #tpu.memory_space<vmem>>, vector<8x256xf32>
    tpu.vector_store %arg11[%c32_82, %c0_83], %90 {strides = array<i32>} : memref<72x256xf32, #tpu.memory_space<vmem>>, vector<8x256xf32>,
    %c0_84 = arith.constant 0 : index
    %c129_85 = arith.constant 129 : index
    %92 = vector.load %arg10[%c0_84, %c129_85] : memref<8x512xf32, #tpu.memory_space<vmem>>, vector<8x256xf32>
    %c5_86 = arith.constant 5 : index
    %c0_87 = arith.constant 0 : index
    %93 = vector.load %arg6[%c5_86, %c0_87] : memref<9x256xf32, #tpu.memory_space<vmem>>, vector<1x256xf32>
    %94 = vector.broadcast %93 : vector<1x256xf32> to vector<8x256xf32>
    %95 = arith.mulf %92, %94 : vector<8x256xf32>
    %c40 = arith.constant 40 : index
    %c0_88 = arith.constant 0 : index
    %96 = vector.load %arg11[%c40, %c0_88] : memref<72x256xf32, #tpu.memory_space<vmem>>, vector<8x256xf32>
    tpu.vector_store %arg11[%c40, %c0_88], %95 {strides = array<i32>} : memref<72x256xf32, #tpu.memory_space<vmem>>, vector<8x256xf32>,
    %c0_89 = arith.constant 0 : index
    %c143_90 = arith.constant 143 : index
    %97 = vector.load %arg10[%c0_89, %c143_90] : memref<8x512xf32, #tpu.memory_space<vmem>>, vector<8x256xf32>
    %c6_91 = arith.constant 6 : index
    %c0_92 = arith.constant 0 : index
    %98 = vector.load %arg6[%c6_91, %c0_92] : memref<9x256xf32, #tpu.memory_space<vmem>>, vector<1x256xf32>
    %99 = vector.broadcast %98 : vector<1x256xf32> to vector<8x256xf32>
    %100 = arith.mulf %97, %99 : vector<8x256xf32>
    %c48 = arith.constant 48 : index
    %c0_93 = arith.constant 0 : index
    %101 = vector.load %arg11[%c48, %c0_93] : memref<72x256xf32, #tpu.memory_space<vmem>>, vector<8x256xf32>
    tpu.vector_store %arg11[%c48, %c0_93], %100 {strides = array<i32>} : memref<72x256xf32, #tpu.memory_space<vmem>>, vector<8x256xf32>,
    %c0_94 = arith.constant 0 : index
    %c144_95 = arith.constant 144 : index
    %102 = vector.load %arg10[%c0_94, %c144_95] : memref<8x512xf32, #tpu.memory_space<vmem>>, vector<8x256xf32>
    %c7_96 = arith.constant 7 : index
    %c0_97 = arith.constant 0 : index
    %103 = vector.load %arg6[%c7_96, %c0_97] : memref<9x256xf32, #tpu.memory_space<vmem>>, vector<1x256xf32>
    %104 = vector.broadcast %103 : vector<1x256xf32> to vector<8x256xf32>
    %105 = arith.mulf %102, %104 : vector<8x256xf32>
    %c56 = arith.constant 56 : index
    %c0_98 = arith.constant 0 : index
    %106 = vector.load %arg11[%c56, %c0_98] : memref<72x256xf32, #tpu.memory_space<vmem>>, vector<8x256xf32>
    tpu.vector_store %arg11[%c56, %c0_98], %105 {strides = array<i32>} : memref<72x256xf32, #tpu.memory_space<vmem>>, vector<8x256xf32>,
    %c0_99 = arith.constant 0 : index
    %c145_100 = arith.constant 145 : index
    %107 = vector.load %arg10[%c0_99, %c145_100] : memref<8x512xf32, #tpu.memory_space<vmem>>, vector<8x256xf32>
    %c8_101 = arith.constant 8 : index
    %c0_102 = arith.constant 0 : index
    %108 = vector.load %arg6[%c8_101, %c0_102] : memref<9x256xf32, #tpu.memory_space<vmem>>, vector<1x256xf32>
    %109 = vector.broadcast %108 : vector<1x256xf32> to vector<8x256xf32>
    %110 = arith.mulf %107, %109 : vector<8x256xf32>
    %c64 = arith.constant 64 : index
    %c0_103 = arith.constant 0 : index
    %111 = vector.load %arg11[%c64, %c0_103] : memref<72x256xf32, #tpu.memory_space<vmem>>, vector<8x256xf32>
    tpu.vector_store %arg11[%c64, %c0_103], %110 {strides = array<i32>} : memref<72x256xf32, #tpu.memory_space<vmem>>, vector<8x256xf32>,
    %c0_104 = arith.constant 0 : index
    %c0_105 = arith.constant 0 : index
    %112 = vector.load %arg11[%c0_104, %c0_105] : memref<72x256xf32, #tpu.memory_space<vmem>>, vector<72x256xf32>
    %c0_106 = arith.constant 0 : index
    %c0_107 = arith.constant 0 : index
    %113 = vector.load %arg4[%c0_106, %c0_107] : memref<8x72xf32, #tpu.memory_space<vmem>>, vector<8x72xf32>
    %cst_108 = arith.constant dense<0.000000e+00> : vector<8x256xf32>
    %114 = tpu.matmul %113, %112, %cst_108 {dimension_numbers = #tpu.dot_dimension_numbers<[1], [0], [0], [1], [0, 0, 1, 1], [], []>} : vector<8x72xf32>, vector<72x256xf32>, vector<8x256xf32> -> vector<8x256xf32>
    %c0_109 = arith.constant 0 : index
    %c0_110 = arith.constant 0 : index
    %115 = vector.load %arg5[%c0_109, %c0_110] : memref<8x3xf32, #tpu.memory_space<vmem>>, vector<8x1xf32>
    %c0_111 = arith.constant 0 : index
    %c1_112 = arith.constant 1 : index
    %116 = vector.load %arg5[%c0_111, %c1_112] : memref<8x3xf32, #tpu.memory_space<vmem>>, vector<8x1xf32>
    %c0_113 = arith.constant 0 : index
    %c2_114 = arith.constant 2 : index
    %117 = vector.load %arg5[%c0_113, %c2_114] : memref<8x3xf32, #tpu.memory_space<vmem>>, vector<8x1xf32>
    %118 = vector.broadcast %115 : vector<8x1xf32> to vector<8x256xf32>
    %119 = arith.addf %114, %118 : vector<8x256xf32>
    %cst_115 = arith.constant 0.000000e+00 : f32
    %120 = vector.broadcast %cst_115 : f32 to vector<8x256xf32>
    %121 = arith.maximumf %119, %120 : vector<8x256xf32>
    %122 = vector.broadcast %116 : vector<8x1xf32> to vector<8x256xf32>
    %123 = arith.mulf %121, %122 : vector<8x256xf32>
    %124 = vector.broadcast %117 : vector<8x1xf32> to vector<8x256xf32>
    %125 = arith.addf %123, %124 : vector<8x256xf32>
    %c0_116 = arith.constant 0 : index
    %c0_117 = arith.constant 0 : index
    %c0_118 = arith.constant 0 : index
    %126 = vector.load %arg7[%c0_116, %c0_117, %c0_118] : memref<1x8x256xf32, #tpu.memory_space<vmem>>, vector<1x8x256xf32>
    %127 = vector.shape_cast %126 : vector<1x8x256xf32> to vector<8x256xf32>
    %128 = vector.shape_cast %125 : vector<8x256xf32> to vector<1x8x256xf32>
    tpu.vector_store %arg7[%c0_116, %c0_117, %c0_118], %128 {strides = array<i32>} : memref<1x8x256xf32, #tpu.memory_space<vmem>>, vector<1x8x256xf32>,
    return
  }
  func.func @transform_0(%arg0: i32) -> (i32, i32, i32) {
    %c0_i32 = arith.constant 0 : i32
    %c0_i32_0 = arith.constant 0 : i32
    %c0_i32_1 = arith.constant 0 : i32
    return %arg0, %c0_i32, %c0_i32_0 : i32, i32, i32
  }
  func.func @transform_1(%arg0: i32) -> (i32, i32) {
    %c0_i32 = arith.constant 0 : i32
    %c0_i32_0 = arith.constant 0 : i32
    %c0_i32_1 = arith.constant 0 : i32
    return %c0_i32, %c0_i32_0 : i32, i32
  }
  func.func @transform_2(%arg0: i32) -> (i32, i32) {
    %c0_i32 = arith.constant 0 : i32
    %c0_i32_0 = arith.constant 0 : i32
    %c0_i32_1 = arith.constant 0 : i32
    return %c0_i32, %c0_i32_0 : i32, i32
  }
  func.func @transform_3(%arg0: i32) -> (i32, i32) {
    %c0_i32 = arith.constant 0 : i32
    %c0_i32_0 = arith.constant 0 : i32
    %c0_i32_1 = arith.constant 0 : i32
    return %c0_i32, %c0_i32_0 : i32, i32
  }
  func.func @transform_4(%arg0: i32) -> (i32, i32) {
    %c0_i32 = arith.constant 0 : i32
    %c0_i32_0 = arith.constant 0 : i32
    %c0_i32_1 = arith.constant 0 : i32
    return %c0_i32, %c0_i32_0 : i32, i32
  }
  func.func @transform_5(%arg0: i32) -> (i32, i32) {
    %c0_i32 = arith.constant 0 : i32
    %c0_i32_0 = arith.constant 0 : i32
    %c0_i32_1 = arith.constant 0 : i32
    return %c0_i32, %c0_i32_0 : i32, i32
  }
  func.func @transform_6(%arg0: i32) -> (i32, i32, i32) {
    %c0_i32 = arith.constant 0 : i32
    %c0_i32_0 = arith.constant 0 : i32
    %c0_i32_1 = arith.constant 0 : i32
    return %arg0, %c0_i32, %c0_i32_0 : i32, i32, i32
  }
}

</mosaic_0001>

<llo_original>
// kernel: down_conv_forward.1
$region0: #{down_conv_forward.1}
  #allocation0 [shape = 'u32[]', space=smem, size = 0x4, offset = 0x4, fixed_abs, tag = 'smem constant byte address 0x4 - core index']
  #allocation1 [shape = 'u32[72,128]{1,0:T(1,128)}', space=vmem, size = 0x9000, scoped, tag = 'internal scratch']
  #allocation2 [shape = 'f32[4,512]{1,0:T(4,128)}', space=vmem, size = 0x2000, scoped, tag = 'scratch operand']
  #allocation3 [shape = 'f32[36,256]{1,0:T(8,128)}', space=vmem, size = 0xa000, scoped, tag = 'scratch operand']
  #allocation4 [shape = 'f32[8,512]{1,0:T(8,128)}', space=vmem, size = 0x4000, scoped, tag = 'scratch operand']
  #allocation5 [shape = 'f32[72,256]{1,0:T(8,128)}', space=vmem, size = 0x12000, scoped, tag = 'scratch operand']
  %s0 = inlined_call_operand.vmem [shape: f32[2,4,256], index: 0, kind: input, shape index: {}]
  %s1 = inlined_call_operand.vmem [shape: f32[8,36], index: 1, kind: input, shape index: {}]
  %s2 = inlined_call_operand.vmem [shape: f32[8,3], index: 2, kind: input, shape index: {}]
  %s3 = inlined_call_operand.vmem [shape: f32[8,72], index: 3, kind: input, shape index: {}]
  %s4 = inlined_call_operand.vmem [shape: f32[8,3], index: 4, kind: input, shape index: {}]
  %s5 = inlined_call_operand.vmem [shape: f32[9,256], index: 5, kind: input, shape index: {}]
  %s6 = inlined_call_operand.vmem [shape: f32[2,8,256], index: 6, kind: output, shape index: {}]
  %s7 = sld [smem:[#allocation0]]
  $region57: #{down_conv_forward.1} parent=0
    _
  %s9 = ssub.s32 1, %s7
  %s10 = scalar_select 0, %s9, %s7
  loop: start=0, step=1, limit=4
  $region2: #{down_conv_forward.1} parent=0 // loop_pre_header
    _
  $region3: #{down_conv_forward.1} parent=0 // loop_header
    %s12 = sphi 0, %s16
    %p13 = scmp.ge.s32.totalorder %s12, 4
    %s22 = sphi 0, %s24
    %s25 = sphi 0, %s22
    %s26 = sphi 0, %s25
    %s42 = sphi 0, %s26
    %s46 = sphi 0, %s46
    %s48 = sphi 0, %s46
    %s49 = sphi 0, %s48
    %s63 = sphi 0, %s49
    %s67 = sphi 0, %s67
    %s69 = sphi 0, %s67
    %s70 = sphi 0, %s69
    %s84 = sphi 0, %s70
    %s88 = sphi 0, %s88
    %s90 = sphi 0, %s88
    %s91 = sphi 0, %s90
    %s105 = sphi 0, %s91
    %s109 = sphi 0, %s109
    %s111 = sphi 0, %s109
    %s112 = sphi 0, %s111
    %s126 = sphi 0, %s112
    %s130 = sphi 0, %s130
    %s132 = sphi 0, %s130
    %s133 = sphi 0, %s132
    %s147 = sphi 0, %s133
    %s153 = sphi 0, %s155
    %s156 = sphi 0, %s153
    %s157 = sphi 0, %s156
    %s173 = sphi 0, %s157
  $region4: #{down_conv_forward.1} parent=0 // loop_header_branch
    %15 = sbr.rel (%p13) target = $region8
  $region5: #{down_conv_forward.1} parent=0 // loop_body
    %s17 = ssub.s32 %s12, 1
    %s18 = ssub.s32 %s12, 2
    %s19 = sadd.s32 %s12, 1
    %s20 = ssub.s32 %s12, %s19
    %p21 = scmp.eq.s32.totalorder %s20, 0
    %s23 = sadd.s32 %s22, 1
    %s24 = scalar_select %p21, %s22, %s23
    %p27 = pneg %p21
    %p28 = scmp.eq.s32.totalorder %s12, 1
    %p29 = por %p27, %p28
    %p30 = scmp.ne.s32.totalorder %s22, %s25
    %p31 = scmp.eq.s32.totalorder %s12, 0
    %p32 = por %p30, %p31
    %p33 = scmp.ne.s32.totalorder %s22, %s25
    %p34 = scmp.eq.s32.totalorder %s17, 1
    %p35 = por %p33, %p34
    %p36 = scmp.ne.s32.totalorder %s25, %s26
    %p37 = scmp.eq.s32.totalorder %s17, 0
    %p38 = por %p36, %p37
    %p39 = scmp.ne.s32.totalorder %s25, %s26
    %p40 = scmp.eq.s32.totalorder %s18, 1
    %p41 = por %p39, %p40
    %p43 = scmp.ne.s32.totalorder %s26, %s42
    %p44 = scmp.eq.s32.totalorder %s18, 0
    %p45 = por %p43, %p44
    %s47 = sadd.s32 %s46, 1
    %p50 = scmp.eq.s32.totalorder %s12, 1
    %p51 = scmp.ne.s32.totalorder %s46, %s48
    %p52 = scmp.eq.s32.totalorder %s12, 0
    %p53 = por %p51, %p52
    %p54 = scmp.ne.s32.totalorder %s46, %s48
    %p55 = scmp.eq.s32.totalorder %s17, 1
    %p56 = por %p54, %p55
    %p57 = scmp.ne.s32.totalorder %s48, %s49
    %p58 = scmp.eq.s32.totalorder %s17, 0
    %p59 = por %p57, %p58
    %p60 = scmp.ne.s32.totalorder %s48, %s49
    %p61 = scmp.eq.s32.totalorder %s18, 1
    %p62 = por %p60, %p61
    %p64 = scmp.ne.s32.totalorder %s49, %s63
    %p65 = scmp.eq.s32.totalorder %s18, 0
    %p66 = por %p64, %p65
    %s68 = sadd.s32 %s67, 1
    %p71 = scmp.eq.s32.totalorder %s12, 1
    %p72 = scmp.ne.s32.totalorder %s67, %s69
    %p73 = scmp.eq.s32.totalorder %s12, 0
    %p74 = por %p72, %p73
    %p75 = scmp.ne.s32.totalorder %s67, %s69
    %p76 = scmp.eq.s32.totalorder %s17, 1
    %p77 = por %p75, %p76
    %p78 = scmp.ne.s32.totalorder %s69, %s70
    %p79 = scmp.eq.s32.totalorder %s17, 0
    %p80 = por %p78, %p79
    %p81 = scmp.ne.s32.totalorder %s69, %s70
    %p82 = scmp.eq.s32.totalorder %s18, 1
    %p83 = por %p81, %p82
    %p85 = scmp.ne.s32.totalorder %s70, %s84
    %p86 = scmp.eq.s32.totalorder %s18, 0
    %p87 = por %p85, %p86
    %s89 = sadd.s32 %s88, 1
    %p92 = scmp.eq.s32.totalorder %s12, 1
    %p93 = scmp.ne.s32.totalorder %s88, %s90
    %p94 = scmp.eq.s32.totalorder %s12, 0
    %p95 = por %p93, %p94
    %p96 = scmp.ne.s32.totalorder %s88, %s90
    %p97 = scmp.eq.s32.totalorder %s17, 1
    %p98 = por %p96, %p97
    %p99 = scmp.ne.s32.totalorder %s90, %s91
    %p100 = scmp.eq.s32.totalorder %s17, 0
    %p101 = por %p99, %p100
    %p102 = scmp.ne.s32.totalorder %s90, %s91
    %p103 = scmp.eq.s32.totalorder %s18, 1
    %p104 = por %p102, %p103
    %p106 = scmp.ne.s32.totalorder %s91, %s105
    %p107 = scmp.eq.s32.totalorder %s18, 0
    %p108 = por %p106, %p107
    %s110 = sadd.s32 %s109, 1
    %p113 = scmp.eq.s32.totalorder %s12, 1
    %p114 = scmp.ne.s32.totalorder %s109, %s111
    %p115 = scmp.eq.s32.totalorder %s12, 0
    %p116 = por %p114, %p115
    %p117 = scmp.ne.s32.totalorder %s109, %s111
    %p118 = scmp.eq.s32.totalorder %s17, 1
    %p119 = por %p117, %p118
    %p120 = scmp.ne.s32.totalorder %s111, %s112
    %p121 = scmp.eq.s32.totalorder %s17, 0
    %p122 = por %p120, %p121
    %p123 = scmp.ne.s32.totalorder %s111, %s112
    %p124 = scmp.eq.s32.totalorder %s18, 1
    %p125 = por %p123, %p124
    %p127 = scmp.ne.s32.totalorder %s112, %s126
    %p128 = scmp.eq.s32.totalorder %s18, 0
    %p129 = por %p127, %p128
    %s131 = sadd.s32 %s130, 1
    %p134 = scmp.eq.s32.totalorder %s12, 1
    %p135 = scmp.ne.s32.totalorder %s130, %s132
    %p136 = scmp.eq.s32.totalorder %s12, 0
    %p137 = por %p135, %p136
    %p138 = scmp.ne.s32.totalorder %s130, %s132
    %p139 = scmp.eq.s32.totalorder %s17, 1
    %p140 = por %p138, %p139
    %p141 = scmp.ne.s32.totalorder %s132, %s133
    %p142 = scmp.eq.s32.totalorder %s17, 0
    %p143 = por %p141, %p142
    %p144 = scmp.ne.s32.totalorder %s132, %s133
    %p145 = scmp.eq.s32.totalorder %s18, 1
    %p146 = por %p144, %p145
    %p148 = scmp.ne.s32.totalorder %s133, %s147
    %p149 = scmp.eq.s32.totalorder %s18, 0
    %p150 = por %p148, %p149
    %s151 = ssub.s32 %s12, %s19
    %p152 = scmp.eq.s32.totalorder %s151, 0
    %s154 = sadd.s32 %s153, 1
    %s155 = scalar_select %p152, %s153, %s154
    %p158 = pneg %p152
    %p159 = scmp.eq.s32.totalorder %s12, 1
    %p160 = por %p158, %p159
    %p161 = scmp.ne.s32.totalorder %s153, %s156
    %p162 = scmp.eq.s32.totalorder %s12, 0
    %p163 = por %p161, %p162
    %p164 = scmp.ne.s32.totalorder %s153, %s156
    %p165 = scmp.eq.s32.totalorder %s17, 1
    %p166 = por %p164, %p165
    %p167 = scmp.ne.s32.totalorder %s156, %s157
    %p168 = scmp.eq.s32.totalorder %s17, 0
    %p169 = por %p167, %p168
    %p170 = scmp.ne.s32.totalorder %s156, %s157
    %p171 = scmp.eq.s32.totalorder %s18, 1
    %p172 = por %p170, %p171
    %p174 = scmp.ne.s32.totalorder %s157, %s173
    %p175 = scmp.eq.s32.totalorder %s18, 0
    %p176 = por %p174, %p175
    %p177 = scmp.le.s32.totalorder 1, %s12
    %p178 = scmp.lt.s32.totalorder %s12, 3
    %p179 = pnand %p177, %p178
    %p180 = pneg %p179
    // Predicated region
    $region9: #{down_conv_forward.1} parent=5 // pred_check
      _
    $region10: #{down_conv_forward.1} parent=5 // pred_check_branch
      %182 = sbr.rel (%p179) target = $region12
    $region11: #{down_conv_forward.1} parent=5 // pred_region
      %s183 = ssub.s32 %s12, 1
      // Predicated region
      $region13: #{down_conv_forward.1} parent=11 // pred_check
        %p184 = pneg %p59
      $region14: #{down_conv_forward.1} parent=11 // pred_check_branch
        %186 = sbr.rel (%p184) target = $region16
      $region15: #{down_conv_forward.1} parent=11 // pred_region
        _
      $region16: #{down_conv_forward.1} parent=11 // pred_fallthru
        _
      // Predicated region
      $region17: #{down_conv_forward.1} parent=11 // pred_check
        %p187 = pneg %p80
      $region18: #{down_conv_forward.1} parent=11 // pred_check_branch
        %189 = sbr.rel (%p187) target = $region20
      $region19: #{down_conv_forward.1} parent=11 // pred_region
        _
      $region20: #{down_conv_forward.1} parent=11 // pred_fallthru
        _
      // Predicated region
      $region21: #{down_conv_forward.1} parent=11 // pred_check
        %p190 = pneg %p101
      $region22: #{down_conv_forward.1} parent=11 // pred_check_branch
        %192 = sbr.rel (%p190) target = $region24
      $region23: #{down_conv_forward.1} parent=11 // pred_region
        _
      $region24: #{down_conv_forward.1} parent=11 // pred_fallthru
        _
      // Predicated region
      $region25: #{down_conv_forward.1} parent=11 // pred_check
        %p193 = pneg %p122
      $region26: #{down_conv_forward.1} parent=11 // pred_check_branch
        %195 = sbr.rel (%p193) target = $region28
      $region27: #{down_conv_forward.1} parent=11 // pred_region
        _
      $region28: #{down_conv_forward.1} parent=11 // pred_fallthru
        _
      // Predicated region
      $region29: #{down_conv_forward.1} parent=11 // pred_check
        %p196 = pneg %p143
      $region30: #{down_conv_forward.1} parent=11 // pred_check_branch
        %198 = sbr.rel (%p196) target = $region32
      $region31: #{down_conv_forward.1} parent=11 // pred_region
        _
      $region32: #{down_conv_forward.1} parent=11 // pred_fallthru
        _
    $region12: #{down_conv_forward.1} parent=5 // pred_fallthru
      _
    %p199 = scmp.lt.s32.totalorder %s12, 2
    // Predicated region
    $region33: #{down_conv_forward.1} parent=5 // pred_check
      %p200 = pneg %p199
    $region34: #{down_conv_forward.1} parent=5 // pred_check_branch
      %202 = sbr.rel (%p200) target = $region36
    $region35: #{down_conv_forward.1} parent=5 // pred_region
      // Predicated region
      $region37: #{down_conv_forward.1} parent=35 // pred_check
        %p203 = pneg %p32
      $region38: #{down_conv_forward.1} parent=35 // pred_check_branch
        %205 = sbr.rel (%p203) target = $region40
      $region39: #{down_conv_forward.1} parent=35 // pred_region
        %p206 = scmp.lt.s32.totalorder %s12, 1
        %s207 = scalar_select %p206, %s12, 1
        %s208 = smul.addr %s207, 2
        %s209 = smul.addr %s208, 4
        %s210 = scalar_lea.vmem %s0, %s209
      $region40: #{down_conv_forward.1} parent=35 // pred_fallthru
        _
    $region36: #{down_conv_forward.1} parent=5 // pred_fallthru
      _
    %p211 = scmp.le.s32.totalorder 1, %s12
    %p212 = scmp.lt.s32.totalorder %s12, 3
    %p213 = pnand %p211, %p212
    %p214 = pneg %p213
    // Predicated region
    $region41: #{down_conv_forward.1} parent=5 // pred_check
      _
    $region42: #{down_conv_forward.1} parent=5 // pred_check_branch
      %216 = sbr.rel (%p213) target = $region44
    $region43: #{down_conv_forward.1} parent=5 // pred_region
      %s217 = ssub.s32 %s12, 1
      %p218 = scmp.lt.s32.totalorder %s17, 1
      %s219 = scalar_select %p218, %s17, 1
      %s220 = smul.addr %s219, 2
      %s221 = smul.addr %s220, 4
      %s222 = scalar_lea.vmem %s0, %s221
      %p223 = pneg %p38
      %p224 = pneg %p35
      %p225 = pneg %p59
      %p226 = pneg %p56
      %p227 = pneg %p80
      %p228 = pneg %p77
      %p229 = pneg %p101
      %p230 = pneg %p98
      %p231 = pneg %p122
      %p232 = pneg %p119
      %p233 = pneg %p143
      %p234 = pneg %p140
      %p235 = pneg %p169
      %p236 = pneg %p166
      %p237 = scmp.lt.s32.totalorder %s17, 1
      %s238 = scalar_select %p237, %s17, 1
      %s239 = smul.addr %s238, 2
      %s240 = smul.addr %s239, 8
      %s241 = scalar_lea.vmem %s6, %s240
      %p242 = scmp.lt.s32.totalorder %s17, 1
      %s243 = scalar_select %p242, %s17, 1
      %s244 = smul.addr %s243, 2
      %s245 = smul.addr %s244, 4
      %s246 = scalar_lea.vmem %s0, %s245
      %p247 = scmp.lt.s32.totalorder %s17, 1
      %s248 = scalar_select %p247, %s17, 1
      %s249 = smul.addr %s248, 2
      %s250 = smul.addr %s249, 8
      %s251 = scalar_lea.vmem %s6, %s250
      %v252 = vld [vmem:[%s246] sm:$0xff]
      %253 = vst [vmem:[#allocation2] sm:$0xff] 0.0
      %254 = vst [vmem:[#allocation2 + $0x8] sm:$0xff] 0.0
      %255 = vst [vmem:[#allocation2 + $0x4] sm:$0xff] %v252
      %v256 = vld [vmem:[#allocation2] sm:$0xff]
      %v257 = vld [vmem:[#allocation2 + $0x8] sm:$0xf]
      %v258 = vld [vmem:[%s5] ss:$8 sm:$0x3]
      %v260 = vperm.slane %v258, 0
      %v261 = vperm.slane %v258, 1
      %v262 = vrot.slane %v261, 4
      %vm263 = vcmask 1043456
      %v264 = vsel %vm263, %v260, %v262
      %265 = vrot.lane.b32.xlu0 %v264, 111
      %v266 = vpop.permute.xlu0 %265
      %v267 = vrot.slane %v266, 4
      %vm268 = vcmask 908288
      %v269 = vsel %vm268, %v267, %v266
      %v272 = vmul.f32 %v256, %v269
      %v273 = vmul.f32 %v257, %v267
      %276 = vst [vmem:[#allocation1] ss:$2 sm:$0xff] %v272
      %s277 = scalar_lea.vmem [#allocation1], 16
      %278 = vst [vmem:[%s277] ss:$2 sm:$0xff] %v273
      %v279 = vld.sshfl [vmem:[#allocation1] sm:$0xff pattern:$0x75316420]
      %v280 = vld.sshfl [vmem:[#allocation1 + $0x8] sm:$0xff pattern:$0x75316420]
      %v281 = vld.sshfl [vmem:[#allocation1 + $0x10] sm:$0xff pattern:$0x75316420]
      %282 = vrot.lane.b32.xlu0 %v279, 17
      %v283 = vpop.permute.xlu0 %282
      %284 = vrot.lane.b32.xlu0 %v280, 17
      %v285 = vpop.permute.xlu0 %284
      %286 = vrot.lane.b32.xlu0 %v281, 17
      %v287 = vpop.permute.xlu0 %286
      %vm288 = vcmask 138240
      %v289 = vsel %vm288, %v283, %v285
      %v290 = vsel %vm288, %v285, %v287
      %293 = vst [vmem:[#allocation3] sm:$0xf] %v289
      %294 = vst [vmem:[#allocation3 + $0x8] sm:$0xf] %v290
      %v295 = vld [vmem:[#allocation2] sm:$0xff]
      %v296 = vld [vmem:[#allocation2 + $0x8] sm:$0xf]
      %s297 = scalar_lea.vmem %s5, 1
      %v298 = vld [vmem:[%s297] ss:$8 sm:$0x3]
      %v300 = vperm.slane %v298, 0
      %v301 = vperm.slane %v298, 1
      %v302 = vrot.slane %v301, 4
      %v303 = vsel %vm263, %v300, %v302
      %304 = vrot.lane.b32.xlu0 %v303, 112
      %v305 = vpop.permute.xlu0 %304
      %v306 = vrot.slane %v305, 4
      %vm307 = vcmask 916480
      %v308 = vsel %vm307, %v306, %v305
      %v311 = vmul.f32 %v295, %v308
      %v312 = vmul.f32 %v296, %v306
      %s315 = scalar_lea.vmem [#allocation1], 1
      %316 = vst [vmem:[%s315] ss:$2 sm:$0xff] %v311
      %s317 = scalar_lea.vmem [#allocation1], 17
      %318 = vst [vmem:[%s317] ss:$2 sm:$0xff] %v312
      %v319 = vld.sshfl [vmem:[#allocation1] sm:$0xff pattern:$0x75316420]
      %v320 = vld.sshfl [vmem:[#allocation1 + $0x8] sm:$0xff pattern:$0x75316420]
      %v321 = vld.sshfl [vmem:[#allocation1 + $0x10] sm:$0xff pattern:$0x75316420]
      %322 = vrot.lane.b32.xlu0 %v319, 16
      %v323 = vpop.permute.xlu0 %322
      %324 = vrot.lane.b32.xlu0 %v320, 16
      %v325 = vpop.permute.xlu0 %324
      %326 = vrot.lane.b32.xlu0 %v321, 16
      %v327 = vpop.permute.xlu0 %326
      %vm328 = vcmask 130048
      %v329 = vsel %vm328, %v323, %v325
      %v330 = vsel %vm328, %v325, %v327
      %333 = vst [vmem:[#allocation3] sm:$0xf0] %v329
      %334 = vst [vmem:[#allocation3 + $0x8] sm:$0xf0] %v330
      %v335 = vld [vmem:[#allocation2] sm:$0xff]
      %v336 = vld [vmem:[#allocation2 + $0x8] sm:$0xf]
      %s337 = scalar_lea.vmem %s5, 2
      %v338 = vld [vmem:[%s337] ss:$8 sm:$0x3]
      %v340 = vperm.slane %v338, 0
      %v341 = vperm.slane %v338, 1
      %v342 = vrot.slane %v341, 4
      %v343 = vsel %vm263, %v340, %v342
      %344 = vrot.lane.b32.xlu0 %v343, 113
      %v345 = vpop.permute.xlu0 %344
      %v346 = vrot.slane %v345, 4
      %vm347 = vcmask 924672
      %v348 = vsel %vm347, %v346, %v345
      %v351 = vmul.f32 %v335, %v348
      %v352 = vmul.f32 %v336, %v346
      %355 = vst [vmem:[#allocation1] ss:$2 sm:$0xff] %v351
      %s356 = scalar_lea.vmem [#allocation1], 16
      %357 = vst [vmem:[%s356] ss:$2 sm:$0xff] %v352
      %v358 = vld.sshfl [vmem:[#allocation1] sm:$0xff pattern:$0x75316420]
      %v359 = vld.sshfl [vmem:[#allocation1 + $0x8] sm:$0xff pattern:$0x75316420]
      %v360 = vld.sshfl [vmem:[#allocation1 + $0x10] sm:$0xff pattern:$0x75316420]
      %361 = vrot.lane.b32.xlu0 %v358, 15
      %v362 = vpop.permute.xlu0 %361
      %363 = vrot.lane.b32.xlu0 %v359, 15
      %v364 = vpop.permute.xlu0 %363
      %365 = vrot.lane.b32.xlu0 %v360, 15
      %v366 = vpop.permute.xlu0 %365
      %vm367 = vcmask 121856
      %v368 = vsel %vm367, %v362, %v364
      %v369 = vsel %vm367, %v364, %v366
      %372 = vst [vmem:[#allocation3 + $0x10] sm:$0xf] %v368
      %373 = vst [vmem:[#allocation3 + $0x18] sm:$0xf] %v369
      %v374 = vld [vmem:[#allocation2] sm:$0xff]
      %v375 = vld [vmem:[#allocation2 + $0x8] sm:$0xf]
      %s376 = scalar_lea.vmem %s5, 3
      %v377 = vld [vmem:[%s376] ss:$8 sm:$0x3]
      %v379 = vperm.slane %v377, 0
      %v380 = vperm.slane %v377, 1
      %v381 = vrot.slane %v380, 4
      %v382 = vsel %vm263, %v379, %v381
      %383 = vrot.lane.b32.xlu0 %v382, 127
      %v384 = vpop.permute.xlu0 %383
      %v385 = vrot.slane %v384, 4
      %vm386 = vcmask 1039360
      %v387 = vsel %vm386, %v385, %v384
      %v390 = vmul.f32 %v374, %v387
      %v391 = vmul.f32 %v375, %v385
      %s394 = scalar_lea.vmem [#allocation1], 1
      %395 = vst [vmem:[%s394] ss:$2 sm:$0xff] %v390
      %s396 = scalar_lea.vmem [#allocation1], 17
      %397 = vst [vmem:[%s396] ss:$2 sm:$0xff] %v391
      %v398 = vld.sshfl [vmem:[#allocation1] sm:$0xff pattern:$0x75316420]
      %v399 = vld.sshfl [vmem:[#allocation1 + $0x8] sm:$0xff pattern:$0x75316420]
      %v400 = vld.sshfl [vmem:[#allocation1 + $0x10] sm:$0xff pattern:$0x75316420]
      %401 = vrot.lane.b32.xlu0 %v398, 1
      %v402 = vpop.permute.xlu0 %401
      %403 = vrot.lane.b32.xlu0 %v399, 1
      %v404 = vpop.permute.xlu0 %403
      %405 = vrot.lane.b32.xlu0 %v400, 1
      %v406 = vpop.permute.xlu0 %405
      %vm407 = vcmask 7168
      %v408 = vsel %vm407, %v402, %v404
      %v409 = vsel %vm407, %v404, %v406
      %412 = vst [vmem:[#allocation3 + $0x10] sm:$0xf0] %v408
      %413 = vst [vmem:[#allocation3 + $0x18] sm:$0xf0] %v409
      %v414 = vld [vmem:[#allocation2 + $0x4] sm:$0xff]
      %s415 = scalar_lea.vmem %s5, 4
      %v416 = vld [vmem:[%s415] ss:$8 sm:$0x3]
      %v418 = vperm.slane %v416, 0
      %v419 = vperm.slane %v416, 1
      %v420 = vrot.slane %v419, 4
      %v421 = vsel %vm263, %v418, %v420
      %v423 = vmul.f32 %v414, %v421
      %425 = vst [vmem:[#allocation1] ss:$2 sm:$0xff] %v423
      %v426 = vld.sshfl [vmem:[#allocation1] sm:$0xff pattern:$0x75316420]
      %v427 = vld.sshfl [vmem:[#allocation1 + $0x8] sm:$0xff pattern:$0x75316420]
      %430 = vst [vmem:[#allocation3 + $0x20] sm:$0xf] %v426
      %431 = vst [vmem:[#allocation3 + $0x28] sm:$0xf] %v427
      %v432 = vld [vmem:[#allocation2 + $0x4] sm:$0xff]
      %v433 = vld [vmem:[#allocation2 + $0xc] sm:$0xf]
      %s434 = scalar_lea.vmem %s5, 5
      %v435 = vld [vmem:[%s434] ss:$8 sm:$0x3]
      %v437 = vperm.slane %v435, 0
      %v438 = vperm.slane %v435, 1
      %v439 = vrot.slane %v438, 4
      %v440 = vsel %vm263, %v437, %v439
      %441 = vrot.lane.b32.xlu0 %v440, 1
      %v442 = vpop.permute.xlu0 %441
      %v443 = vrot.slane %v442, 4
      %v444 = vsel %vm407, %v443, %v442
      %v447 = vmul.f32 %v432, %v444
      %v448 = vmul.f32 %v433, %v443
      %s451 = scalar_lea.vmem [#allocation1], 1
      %452 = vst [vmem:[%s451] ss:$2 sm:$0xff] %v447
      %s453 = scalar_lea.vmem [#allocation1], 17
      %454 = vst [vmem:[%s453] ss:$2 sm:$0xff] %v448
      %v455 = vld.sshfl [vmem:[#allocation1] sm:$0xff pattern:$0x75316420]
      %v456 = vld.sshfl [vmem:[#allocation1 + $0x8] sm:$0xff pattern:$0x75316420]
      %v457 = vld.sshfl [vmem:[#allocation1 + $0x10] sm:$0xff pattern:$0x75316420]
      %458 = vrot.lane.b32.xlu0 %v455, 127
      %v459 = vpop.permute.xlu0 %458
      %460 = vrot.lane.b32.xlu0 %v456, 127
      %v461 = vpop.permute.xlu0 %460
      %462 = vrot.lane.b32.xlu0 %v457, 127
      %v463 = vpop.permute.xlu0 %462
      %v464 = vsel %vm386, %v459, %v461
      %v465 = vsel %vm386, %v461, %v463
      %468 = vst [vmem:[#allocation3 + $0x20] sm:$0xf0] %v464
      %469 = vst [vmem:[#allocation3 + $0x28] sm:$0xf0] %v465
      %v470 = vld [vmem:[#allocation2 + $0x4] sm:$0xff]
      %v471 = vld [vmem:[#allocation2 + $0xc] sm:$0xf]
      %s472 = scalar_lea.vmem %s5, 6
      %v473 = vld [vmem:[%s472] ss:$8 sm:$0x3]
      %v475 = vperm.slane %v473, 0
      %v476 = vperm.slane %v473, 1
      %v477 = vrot.slane %v476, 4
      %v478 = vsel %vm263, %v475, %v477
      %479 = vrot.lane.b32.xlu0 %v478, 15
      %v480 = vpop.permute.xlu0 %479
      %v481 = vrot.slane %v480, 4
      %v482 = vsel %vm367, %v481, %v480
      %v485 = vmul.f32 %v470, %v482
      %v486 = vmul.f32 %v471, %v481
      %489 = vst [vmem:[#allocation1] ss:$2 sm:$0xff] %v485
      %s490 = scalar_lea.vmem [#allocation1], 16
      %491 = vst [vmem:[%s490] ss:$2 sm:$0xff] %v486
      %v492 = vld.sshfl [vmem:[#allocation1] sm:$0xff pattern:$0x75316420]
      %v493 = vld.sshfl [vmem:[#allocation1 + $0x8] sm:$0xff pattern:$0x75316420]
      %v494 = vld.sshfl [vmem:[#allocation1 + $0x10] sm:$0xff pattern:$0x75316420]
      %495 = vrot.lane.b32.xlu0 %v492, 113
      %v496 = vpop.permute.xlu0 %495
      %497 = vrot.lane.b32.xlu0 %v493, 113
      %v498 = vpop.permute.xlu0 %497
      %499 = vrot.lane.b32.xlu0 %v494, 113
      %v500 = vpop.permute.xlu0 %499
      %v501 = vsel %vm347, %v496, %v498
      %v502 = vsel %vm347, %v498, %v500
      %505 = vst [vmem:[#allocation3 + $0x30] sm:$0xf] %v501
      %506 = vst [vmem:[#allocation3 + $0x38] sm:$0xf] %v502
      %v507 = vld [vmem:[#allocation2 + $0x4] sm:$0xff]
      %v508 = vld [vmem:[#allocation2 + $0xc] sm:$0xf]
      %s509 = scalar_lea.vmem %s5, 7
      %v510 = vld [vmem:[%s509] ss:$8 sm:$0x3]
      %v512 = vperm.slane %v510, 0
      %v513 = vperm.slane %v510, 1
      %v514 = vrot.slane %v513, 4
      %v515 = vsel %vm263, %v512, %v514
      %516 = vrot.lane.b32.xlu0 %v515, 16
      %v517 = vpop.permute.xlu0 %516
      %v518 = vrot.slane %v517, 4
      %v519 = vsel %vm328, %v518, %v517
      %v522 = vmul.f32 %v507, %v519
      %v523 = vmul.f32 %v508, %v518
      %s526 = scalar_lea.vmem [#allocation1], 1
      %527 = vst [vmem:[%s526] ss:$2 sm:$0xff] %v522
      %s528 = scalar_lea.vmem [#allocation1], 17
      %529 = vst [vmem:[%s528] ss:$2 sm:$0xff] %v523
      %v530 = vld.sshfl [vmem:[#allocation1] sm:$0xff pattern:$0x75316420]
      %v531 = vld.sshfl [vmem:[#allocation1 + $0x8] sm:$0xff pattern:$0x75316420]
      %v532 = vld.sshfl [vmem:[#allocation1 + $0x10] sm:$0xff pattern:$0x75316420]
      %533 = vrot.lane.b32.xlu0 %v530, 112
      %v534 = vpop.permute.xlu0 %533
      %535 = vrot.lane.b32.xlu0 %v531, 112
      %v536 = vpop.permute.xlu0 %535
      %537 = vrot.lane.b32.xlu0 %v532, 112
      %v538 = vpop.permute.xlu0 %537
      %v539 = vsel %vm307, %v534, %v536
      %v540 = vsel %vm307, %v536, %v538
      %543 = vst [vmem:[#allocation3 + $0x30] sm:$0xf0] %v539
      %544 = vst [vmem:[#allocation3 + $0x38] sm:$0xf0] %v540
      %v545 = vld [vmem:[#allocation2 + $0x4] sm:$0xff]
      %v546 = vld [vmem:[#allocation2 + $0xc] sm:$0xf]
      %s547 = scalar_lea.vmem %s5, 16
      %v548 = vld [vmem:[%s547] ss:$8 sm:$0x3]
      %v550 = vperm.slane %v548, 0
      %v551 = vperm.slane %v548, 1
      %v552 = vrot.slane %v551, 4
      %v553 = vsel %vm263, %v550, %v552
      %554 = vrot.lane.b32.xlu0 %v553, 17
      %v555 = vpop.permute.xlu0 %554
      %v556 = vrot.slane %v555, 4
      %v557 = vsel %vm288, %v556, %v555
      %v560 = vmul.f32 %v545, %v557
      %v561 = vmul.f32 %v546, %v556
      %564 = vst [vmem:[#allocation1] ss:$2 sm:$0xff] %v560
      %s565 = scalar_lea.vmem [#allocation1], 16
      %566 = vst [vmem:[%s565] ss:$2 sm:$0xff] %v561
      %v567 = vld.sshfl [vmem:[#allocation1] sm:$0xff pattern:$0x75316420]
      %v568 = vld.sshfl [vmem:[#allocation1 + $0x8] sm:$0xff pattern:$0x75316420]
      %v569 = vld.sshfl [vmem:[#allocation1 + $0x10] sm:$0xff pattern:$0x75316420]
      %570 = vrot.lane.b32.xlu0 %v567, 111
      %v571 = vpop.permute.xlu0 %570
      %572 = vrot.lane.b32.xlu0 %v568, 111
      %v573 = vpop.permute.xlu0 %572
      %574 = vrot.lane.b32.xlu0 %v569, 111
      %v575 = vpop.permute.xlu0 %574
      %v576 = vsel %vm268, %v571, %v573
      %v577 = vsel %vm268, %v573, %v575
      %580 = vst [vmem:[#allocation3 + $0x40] sm:$0xf] %v576
      %581 = vst [vmem:[#allocation3 + $0x48] sm:$0xf] %v577
      %v582 = vld [vmem:[#allocation3] sm:$0xff]
      %v583 = vld [vmem:[#allocation3 + $0x8] sm:$0xff]
      %v584 = vld [vmem:[#allocation3 + $0x10] sm:$0xff]
      %v585 = vld [vmem:[#allocation3 + $0x18] sm:$0xff]
      %v586 = vld [vmem:[#allocation3 + $0x20] sm:$0xff]
      %v587 = vld [vmem:[#allocation3 + $0x28] sm:$0xff]
      %v588 = vld [vmem:[#allocation3 + $0x30] sm:$0xff]
      %v589 = vld [vmem:[#allocation3 + $0x38] sm:$0xff]
      %v590 = vld [vmem:[#allocation3 + $0x40] sm:$0xf]
      %v591 = vld [vmem:[#allocation3 + $0x48] sm:$0xf]
      %v592 = vld [vmem:[%s1] sm:$0xff]
      %v593 = vld [vmem:[%s2] sm:$0xff]
      %595 = vset.pattern.permute.xlu0 0
      %596 = vperm.xlu0 %595, %v593
      %v597 = vpop.permute.xlu0 %596
      %vm599 = vcmask 293888
      %v601 = vsel %vm599, %v592, 0
      %v604 = vsel %vm263, %v590, 0
      %v607 = vsel %vm263, %v591, 0
      %609 = vmatpush.msra.mxu0 0.0
      %610 = vmatpush.msra.mxu0 0.0
      %611 = vmatpush.msra.mxu0 0.0
      %612 = vmatpush.msra.mxu0 0.0
      %613 = vmatpush.msra.mxu0 0.0
      %614 = vmatpush.msra.mxu0 0.0
      %615 = vmatpush.msra.mxu0 0.0
      %616 = vmatpush.msra.mxu0 0.0
      %617 = vmatpush.msra.mxu0 0.0
      %618 = vmatpush.msra.mxu0 0.0
      %619 = vmatpush.msra.mxu0 0.0
      %620 = vmatpush.msra.mxu0 %v604
      %621 = vmatpush.msra.mxu0 %v588
      %622 = vmatpush.msra.mxu0 %v586
      %623 = vmatpush.msra.mxu0 %v584
      %624 = vmatpush.msra.mxu0 %v582
      %625 = vmatmul.f32.gmra.mxu0 %v601
      %v626 = vpop.f32.mrf.mxu0
      %v627 = vadd.f32 %v597, %v626
      %628 = vdwg.mxu0
      %629 = vmatpush.msra.mxu0 0.0
      %630 = vmatpush.msra.mxu0 0.0
      %631 = vmatpush.msra.mxu0 0.0
      %632 = vmatpush.msra.mxu0 0.0
      %633 = vmatpush.msra.mxu0 0.0
      %634 = vmatpush.msra.mxu0 0.0
      %635 = vmatpush.msra.mxu0 0.0
      %636 = vmatpush.msra.mxu0 0.0
      %637 = vmatpush.msra.mxu0 0.0
      %638 = vmatpush.msra.mxu0 0.0
      %639 = vmatpush.msra.mxu0 0.0
      %640 = vmatpush.msra.mxu0 %v607
      %641 = vmatpush.msra.mxu0 %v589
      %642 = vmatpush.msra.mxu0 %v587
      %643 = vmatpush.msra.mxu0 %v585
      %644 = vmatpush.msra.mxu0 %v583
      %645 = vmatmul.f32.gmra.mxu0 %v601
      %v646 = vpop.f32.mrf.mxu0
      %v647 = vadd.f32 %v597, %v646
      %648 = vdwg.mxu0
      %v649 = vmax.f32 %v627, 0.0
      %v650 = vmax.f32 %v647, 0.0
      %651 = vset.pattern.permute.xlu0 1
      %652 = vperm.xlu0 %651, %v593
      %v653 = vpop.permute.xlu0 %652
      %v655 = vmul.f32 %v649, %v653
      %v656 = vmul.f32 %v650, %v653
      %657 = vset.pattern.permute.xlu0 2
      %658 = vperm.xlu0 %657, %v593
      %v659 = vpop.permute.xlu0 %658
      %v661 = vadd.f32 %v655, %v659
      %v662 = vadd.f32 %v656, %v659
      %663 = vst [vmem:[#allocation4] sm:$0xff] 0.0
      %664 = vst [vmem:[#allocation4 + $0x8] sm:$0xff] 0.0
      %665 = vst [vmem:[#allocation4 + $0x10] sm:$0xff] 0.0
      %666 = vst [vmem:[#allocation4 + $0x18] sm:$0xff] 0.0
      %667 = vst [vmem:[#allocation4 + $0x8] sm:$0xff] %v661
      %668 = vst [vmem:[#allocation4 + $0x10] sm:$0xff] %v662
      %v669 = vld [vmem:[#allocation4] sm:$0xff]
      %v670 = vld [vmem:[#allocation4 + $0x8] sm:$0xff]
      %v671 = vld [vmem:[#allocation4 + $0x10] sm:$0xff]
      %v672 = vld [vmem:[%s5] ss:$8 sm:$0x3]
      %v674 = vperm.slane %v672, 0
      %v675 = vperm.slane %v672, 1
      %676 = vrot.lane.b32.xlu0 %v674, 111
      %v677 = vpop.permute.xlu0 %676
      %678 = vrot.lane.b32.xlu0 %v675, 111
      %v679 = vpop.permute.xlu0 %678
      %v680 = vsel %vm268, %v677, %v679
      %v684 = vmul.f32 %v669, %v677
      %v685 = vmul.f32 %v670, %v680
      %v686 = vmul.f32 %v671, %v679
      %690 = vrot.lane.b32.xlu0 %v684, 17
      %v691 = vpop.permute.xlu0 %690
      %692 = vrot.lane.b32.xlu0 %v685, 17
      %v693 = vpop.permute.xlu0 %692
      %694 = vrot.lane.b32.xlu0 %v686, 17
      %v695 = vpop.permute.xlu0 %694
      %v696 = vsel %vm288, %v691, %v693
      %v697 = vsel %vm288, %v693, %v695
      %700 = vst [vmem:[#allocation5] sm:$0xff] %v696
      %701 = vst [vmem:[#allocation5 + $0x8] sm:$0xff] %v697
      %v702 = vld [vmem:[#allocation4] sm:$0xff]
      %v703 = vld [vmem:[#allocation4 + $0x8] sm:$0xff]
      %v704 = vld [vmem:[#allocation4 + $0x10] sm:$0xff]
      %v705 = vld [vmem:[%s297] ss:$8 sm:$0x3]
      %v707 = vperm.slane %v705, 0
      %v708 = vperm.slane %v705, 1
      %709 = vrot.lane.b32.xlu0 %v707, 112
      %v710 = vpop.permute.xlu0 %709
      %711 = vrot.lane.b32.xlu0 %v708, 112
      %v712 = vpop.permute.xlu0 %711
      %v713 = vsel %vm307, %v710, %v712
      %v717 = vmul.f32 %v702, %v710
      %v718 = vmul.f32 %v703, %v713
      %v719 = vmul.f32 %v704, %v712
      %723 = vrot.lane.b32.xlu0 %v717, 16
      %v724 = vpop.permute.xlu0 %723
      %725 = vrot.lane.b32.xlu0 %v718, 16
      %v726 = vpop.permute.xlu0 %725
      %727 = vrot.lane.b32.xlu0 %v719, 16
      %v728 = vpop.permute.xlu0 %727
      %v729 = vsel %vm328, %v724, %v726
      %v730 = vsel %vm328, %v726, %v728
      %733 = vst [vmem:[#allocation5 + $0x10] sm:$0xff] %v729
      %734 = vst [vmem:[#allocation5 + $0x18] sm:$0xff] %v730
      %v735 = vld [vmem:[#allocation4] sm:$0xff]
      %v736 = vld [vmem:[#allocation4 + $0x8] sm:$0xff]
      %v737 = vld [vmem:[#allocation4 + $0x10] sm:$0xff]
      %v738 = vld [vmem:[%s337] ss:$8 sm:$0x3]
      %v740 = vperm.slane %v738, 0
      %v741 = vperm.slane %v738, 1
      %742 = vrot.lane.b32.xlu0 %v740, 113
      %v743 = vpop.permute.xlu0 %742
      %744 = vrot.lane.b32.xlu0 %v741, 113
      %v745 = vpop.permute.xlu0 %744
      %v746 = vsel %vm347, %v743, %v745
      %v750 = vmul.f32 %v735, %v743
      %v751 = vmul.f32 %v736, %v746
      %v752 = vmul.f32 %v737, %v745
      %756 = vrot.lane.b32.xlu0 %v750, 15
      %v757 = vpop.permute.xlu0 %756
      %758 = vrot.lane.b32.xlu0 %v751, 15
      %v759 = vpop.permute.xlu0 %758
      %760 = vrot.lane.b32.xlu0 %v752, 15
      %v761 = vpop.permute.xlu0 %760
      %v762 = vsel %vm367, %v757, %v759
      %v763 = vsel %vm367, %v759, %v761
      %766 = vst [vmem:[#allocation5 + $0x20] sm:$0xff] %v762
      %767 = vst [vmem:[#allocation5 + $0x28] sm:$0xff] %v763
      %v768 = vld [vmem:[#allocation4] sm:$0xff]
      %v769 = vld [vmem:[#allocation4 + $0x8] sm:$0xff]
      %v770 = vld [vmem:[#allocation4 + $0x10] sm:$0xff]
      %v771 = vld [vmem:[%s376] ss:$8 sm:$0x3]
      %v773 = vperm.slane %v771, 0
      %v774 = vperm.slane %v771, 1
      %775 = vrot.lane.b32.xlu0 %v773, 127
      %v776 = vpop.permute.xlu0 %775
      %777 = vrot.lane.b32.xlu0 %v774, 127
      %v778 = vpop.permute.xlu0 %777
      %v779 = vsel %vm386, %v776, %v778
      %v783 = vmul.f32 %v768, %v776
      %v784 = vmul.f32 %v769, %v779
      %v785 = vmul.f32 %v770, %v778
      %789 = vrot.lane.b32.xlu0 %v783, 1
      %v790 = vpop.permute.xlu0 %789
      %791 = vrot.lane.b32.xlu0 %v784, 1
      %v792 = vpop.permute.xlu0 %791
      %793 = vrot.lane.b32.xlu0 %v785, 1
      %v794 = vpop.permute.xlu0 %793
      %v795 = vsel %vm407, %v790, %v792
      %v796 = vsel %vm407, %v792, %v794
      %799 = vst [vmem:[#allocation5 + $0x30] sm:$0xff] %v795
      %800 = vst [vmem:[#allocation5 + $0x38] sm:$0xff] %v796
      %v801 = vld [vmem:[#allocation4 + $0x8] sm:$0xff]
      %v802 = vld [vmem:[#allocation4 + $0x10] sm:$0xff]
      %v803 = vld [vmem:[%s415] ss:$8 sm:$0x3]
      %v805 = vperm.slane %v803, 0
      %v806 = vperm.slane %v803, 1
      %v809 = vmul.f32 %v801, %v805
      %v810 = vmul.f32 %v802, %v806
      %811 = vst [vmem:[#allocation5 + $0x40] sm:$0xff] %v809
      %812 = vst [vmem:[#allocation5 + $0x48] sm:$0xff] %v810
      %v813 = vld [vmem:[#allocation4 + $0x8] sm:$0xff]
      %v814 = vld [vmem:[#allocation4 + $0x10] sm:$0xff]
      %v815 = vld [vmem:[#allocation4 + $0x18] sm:$0xff]
      %v816 = vld [vmem:[%s434] ss:$8 sm:$0x3]
      %v818 = vperm.slane %v816, 0
      %v819 = vperm.slane %v816, 1
      %820 = vrot.lane.b32.xlu0 %v818, 1
      %v821 = vpop.permute.xlu0 %820
      %822 = vrot.lane.b32.xlu0 %v819, 1
      %v823 = vpop.permute.xlu0 %822
      %v824 = vsel %vm407, %v821, %v823
      %v828 = vmul.f32 %v813, %v821
      %v829 = vmul.f32 %v814, %v824
      %v830 = vmul.f32 %v815, %v823
      %834 = vrot.lane.b32.xlu0 %v828, 127
      %v835 = vpop.permute.xlu0 %834
      %836 = vrot.lane.b32.xlu0 %v829, 127
      %v837 = vpop.permute.xlu0 %836
      %838 = vrot.lane.b32.xlu0 %v830, 127
      %v839 = vpop.permute.xlu0 %838
      %v840 = vsel %vm386, %v835, %v837
      %v841 = vsel %vm386, %v837, %v839
      %844 = vst [vmem:[#allocation5 + $0x50] sm:$0xff] %v840
      %845 = vst [vmem:[#allocation5 + $0x58] sm:$0xff] %v841
      %v846 = vld [vmem:[#allocation4 + $0x8] sm:$0xff]
      %v847 = vld [vmem:[#allocation4 + $0x10] sm:$0xff]
      %v848 = vld [vmem:[#allocation4 + $0x18] sm:$0xff]
      %v849 = vld [vmem:[%s472] ss:$8 sm:$0x3]
      %v851 = vperm.slane %v849, 0
      %v852 = vperm.slane %v849, 1
      %853 = vrot.lane.b32.xlu0 %v851, 15
      %v854 = vpop.permute.xlu0 %853
      %855 = vrot.lane.b32.xlu0 %v852, 15
      %v856 = vpop.permute.xlu0 %855
      %v857 = vsel %vm367, %v854, %v856
      %v861 = vmul.f32 %v846, %v854
      %v862 = vmul.f32 %v847, %v857
      %v863 = vmul.f32 %v848, %v856
      %867 = vrot.lane.b32.xlu0 %v861, 113
      %v868 = vpop.permute.xlu0 %867
      %869 = vrot.lane.b32.xlu0 %v862, 113
      %v870 = vpop.permute.xlu0 %869
      %871 = vrot.lane.b32.xlu0 %v863, 113
      %v872 = vpop.permute.xlu0 %871
      %v873 = vsel %vm347, %v868, %v870
      %v874 = vsel %vm347, %v870, %v872
      %877 = vst [vmem:[#allocation5 + $0x60] sm:$0xff] %v873
      %878 = vst [vmem:[#allocation5 + $0x68] sm:$0xff] %v874
      %v879 = vld [vmem:[#allocation4 + $0x8] sm:$0xff]
      %v880 = vld [vmem:[#allocation4 + $0x10] sm:$0xff]
      %v881 = vld [vmem:[#allocation4 + $0x18] sm:$0xff]
      %v882 = vld [vmem:[%s509] ss:$8 sm:$0x3]
      %v884 = vperm.slane %v882, 0
      %v885 = vperm.slane %v882, 1
      %886 = vrot.lane.b32.xlu0 %v884, 16
      %v887 = vpop.permute.xlu0 %886
      %888 = vrot.lane.b32.xlu0 %v885, 16
      %v889 = vpop.permute.xlu0 %888
      %v890 = vsel %vm328, %v887, %v889
      %v894 = vmul.f32 %v879, %v887
      %v895 = vmul.f32 %v880, %v890
      %v896 = vmul.f32 %v881, %v889
      %900 = vrot.lane.b32.xlu0 %v894, 112
      %v901 = vpop.permute.xlu0 %900
      %902 = vrot.lane.b32.xlu0 %v895, 112
      %v903 = vpop.permute.xlu0 %902
      %904 = vrot.lane.b32.xlu0 %v896, 112
      %v905 = vpop.permute.xlu0 %904
      %v906 = vsel %vm307, %v901, %v903
      %v907 = vsel %vm307, %v903, %v905
      %910 = vst [vmem:[#allocation5 + $0x70] sm:$0xff] %v906
      %911 = vst [vmem:[#allocation5 + $0x78] sm:$0xff] %v907
      %v912 = vld [vmem:[#allocation4 + $0x8] sm:$0xff]
      %v913 = vld [vmem:[#allocation4 + $0x10] sm:$0xff]
      %v914 = vld [vmem:[#allocation4 + $0x18] sm:$0xff]
      %v915 = vld [vmem:[%s547] ss:$8 sm:$0x3]
      %v917 = vperm.slane %v915, 0
      %v918 = vperm.slane %v915, 1
      %919 = vrot.lane.b32.xlu0 %v917, 17
      %v920 = vpop.permute.xlu0 %919
      %921 = vrot.lane.b32.xlu0 %v918, 17
      %v922 = vpop.permute.xlu0 %921
      %v923 = vsel %vm288, %v920, %v922
      %v927 = vmul.f32 %v912, %v920
      %v928 = vmul.f32 %v913, %v923
      %v929 = vmul.f32 %v914, %v922
      %933 = vrot.lane.b32.xlu0 %v927, 111
      %v934 = vpop.permute.xlu0 %933
      %935 = vrot.lane.b32.xlu0 %v928, 111
      %v936 = vpop.permute.xlu0 %935
      %937 = vrot.lane.b32.xlu0 %v929, 111
      %v938 = vpop.permute.xlu0 %937
      %v939 = vsel %vm268, %v934, %v936
      %v940 = vsel %vm268, %v936, %v938
      %943 = vst [vmem:[#allocation5 + $0x80] sm:$0xff] %v939
      %944 = vst [vmem:[#allocation5 + $0x88] sm:$0xff] %v940
      %v945 = vld [vmem:[#allocation5] sm:$0xff]
      %v946 = vld [vmem:[#allocation5 + $0x8] sm:$0xff]
      %v947 = vld [vmem:[#allocation5 + $0x10] sm:$0xff]
      %v948 = vld [vmem:[#allocation5 + $0x18] sm:$0xff]
      %v949 = vld [vmem:[#allocation5 + $0x20] sm:$0xff]
      %v950 = vld [vmem:[#allocation5 + $0x28] sm:$0xff]
      %v951 = vld [vmem:[#allocation5 + $0x30] sm:$0xff]
      %v952 = vld [vmem:[#allocation5 + $0x38] sm:$0xff]
      %v953 = vld [vmem:[#allocation5 + $0x40] sm:$0xff]
      %v954 = vld [vmem:[#allocation5 + $0x48] sm:$0xff]
      %v955 = vld [vmem:[#allocation5 + $0x50] sm:$0xff]
      %v956 = vld [vmem:[#allocation5 + $0x58] sm:$0xff]
      %v957 = vld [vmem:[#allocation5 + $0x60] sm:$0xff]
      %v958 = vld [vmem:[#allocation5 + $0x68] sm:$0xff]
      %v959 = vld [vmem:[#allocation5 + $0x70] sm:$0xff]
      %v960 = vld [vmem:[#allocation5 + $0x78] sm:$0xff]
      %v961 = vld [vmem:[#allocation5 + $0x80] sm:$0xff]
      %v962 = vld [vmem:[#allocation5 + $0x88] sm:$0xff]
      %v963 = vld [vmem:[%s3] sm:$0xff]
      %v964 = vld [vmem:[%s4] sm:$0xff]
      %966 = vset.pattern.permute.xlu0 0
      %967 = vperm.xlu0 %966, %v964
      %v968 = vpop.permute.xlu0 %967
      %vm970 = vcmask 588800
      %v972 = vsel %vm970, %v963, 0
      %974 = vmatpush.msra.mxu0 0.0
      %975 = vmatpush.msra.mxu0 0.0
      %976 = vmatpush.msra.mxu0 0.0
      %977 = vmatpush.msra.mxu0 0.0
      %978 = vmatpush.msra.mxu0 0.0
      %979 = vmatpush.msra.mxu0 0.0
      %980 = vmatpush.msra.mxu0 0.0
      %981 = vmatpush.msra.mxu0 %v961
      %982 = vmatpush.msra.mxu0 %v959
      %983 = vmatpush.msra.mxu0 %v957
      %984 = vmatpush.msra.mxu0 %v955
      %985 = vmatpush.msra.mxu0 %v953
      %986 = vmatpush.msra.mxu0 %v951
      %987 = vmatpush.msra.mxu0 %v949
      %988 = vmatpush.msra.mxu0 %v947
      %989 = vmatpush.msra.mxu0 %v945
      %990 = vmatmul.f32.gmra.mxu0 %v972
      %v991 = vpop.f32.mrf.mxu0
      %v992 = vadd.f32 %v968, %v991
      %993 = vdwg.mxu0
      %994 = vmatpush.msra.mxu0 0.0
      %995 = vmatpush.msra.mxu0 0.0
      %996 = vmatpush.msra.mxu0 0.0
      %997 = vmatpush.msra.mxu0 0.0
      %998 = vmatpush.msra.mxu0 0.0
      %999 = vmatpush.msra.mxu0 0.0
      %1000 = vmatpush.msra.mxu0 0.0
      %1001 = vmatpush.msra.mxu0 %v962
      %1002 = vmatpush.msra.mxu0 %v960
      %1003 = vmatpush.msra.mxu0 %v958
      %1004 = vmatpush.msra.mxu0 %v956
      %1005 = vmatpush.msra.mxu0 %v954
      %1006 = vmatpush.msra.mxu0 %v952
      %1007 = vmatpush.msra.mxu0 %v950
      %1008 = vmatpush.msra.mxu0 %v948
      %1009 = vmatpush.msra.mxu0 %v946
      %1010 = vmatmul.f32.gmra.mxu0 %v972
      %v1011 = vpop.f32.mrf.mxu0
      %v1012 = vadd.f32 %v968, %v1011
      %1013 = vdwg.mxu0
      %v1014 = vmax.f32 %v992, 0.0
      %v1015 = vmax.f32 %v1012, 0.0
      %1016 = vset.pattern.permute.xlu0 1
      %1017 = vperm.xlu0 %1016, %v964
      %v1018 = vpop.permute.xlu0 %1017
      %v1020 = vmul.f32 %v1014, %v1018
      %v1021 = vmul.f32 %v1015, %v1018
      %1022 = vset.pattern.permute.xlu0 2
      %1023 = vperm.xlu0 %1022, %v964
      %v1024 = vpop.permute.xlu0 %1023
      %v1026 = vadd.f32 %v1020, %v1024
      %v1027 = vadd.f32 %v1021, %v1024
      %1028 = vst [vmem:[%s251] sm:$0xff] %v1026
      %1029 = vst [vmem:[%s251 + $0x8] sm:$0xff] %v1027
      %p1030 = scmp.lt.s32.totalorder %s17, 1
      %s1031 = scalar_select %p1030, %s17, 1
      %s1032 = smul.addr %s1031, 2
      %s1033 = smul.addr %s1032, 8
      %s1034 = scalar_lea.vmem %s6, %s1033
      // Predicated region
      $region45: #{down_conv_forward.1} parent=43 // pred_check
        %p1035 = pneg %p166
      $region46: #{down_conv_forward.1} parent=43 // pred_check_branch
        %1037 = sbr.rel (%p1035) target = $region48
      $region47: #{down_conv_forward.1} parent=43 // pred_region
        _
      $region48: #{down_conv_forward.1} parent=43 // pred_fallthru
        _
    $region44: #{down_conv_forward.1} parent=5 // pred_fallthru
      _
    %p1038 = scmp.le.s32.totalorder 2, %s12
    // Predicated region
    $region49: #{down_conv_forward.1} parent=5 // pred_check
      %p1039 = pneg %p1038
    $region50: #{down_conv_forward.1} parent=5 // pred_check_branch
      %1041 = sbr.rel (%p1039) target = $region52
    $region51: #{down_conv_forward.1} parent=5 // pred_region
      %s1042 = ssub.s32 %s12, 2
      // Predicated region
      $region53: #{down_conv_forward.1} parent=51 // pred_check
        %p1043 = pneg %p172
      $region54: #{down_conv_forward.1} parent=51 // pred_check_branch
        %1045 = sbr.rel (%p1043) target = $region56
      $region55: #{down_conv_forward.1} parent=51 // pred_region
        %p1046 = scmp.lt.s32.totalorder %s18, 1
        %s1047 = scalar_select %p1046, %s18, 1
        %s1048 = smul.addr %s1047, 2
        %s1049 = smul.addr %s1048, 8
        %s1050 = scalar_lea.vmem %s6, %s1049
      $region56: #{down_conv_forward.1} parent=51 // pred_fallthru
        _
    $region52: #{down_conv_forward.1} parent=5 // pred_fallthru
      _
  $region6: #{down_conv_forward.1} parent=0 // loop_footer
    %s16 = sadd.s32 1, %s12
  $region7: #{down_conv_forward.1} parent=0 // loop_footer_branch
    %11 = sbr.rel target = $region3
  $region8: #{down_conv_forward.1} parent=0 // loop_exit
    _

</llo_original>
